<compile_context>
chip_gen: v7x
topology: tpu7x:2x2x1
jax: 0.10.0
libtpu: 0.0.40
codegen_flags: <defaults>
</compile_context>

<pallas_src>
import functools

import jax
import jax.numpy as jnp
from jax.experimental import pallas as pl
from jax.experimental.pallas import tpu as pltpu


# ---------------------------------------------------------------------------
# Stage 1: lane-dense channel reduction (sum + max over C), C-tiled grid.
# ---------------------------------------------------------------------------
def _channel_reduce_kernel(x_ref, sum_ref, max_ref):
    # x_ref:   (1, tC, HW) VMEM block, lane-dense last dim
    # sum_ref: (1, 1, HW)  f32 output block, resident across the C grid axis
    # max_ref: (1, 1, HW)  f32 output block, resident across the C grid axis
    x = x_ref[0]                                                  # (tC, HW)
    part_sum = jnp.sum(x, axis=0, keepdims=True, dtype=jnp.float32)   # (1, HW)
    part_max = jnp.max(x, axis=0, keepdims=True).astype(jnp.float32)  # (1, HW)

    @pl.when(pl.program_id(1) == 0)
    def _init():
        sum_ref[0] = part_sum
        max_ref[0] = part_max

    @pl.when(pl.program_id(1) != 0)
    def _accumulate():
        sum_ref[0] = sum_ref[0] + part_sum
        max_ref[0] = jnp.maximum(max_ref[0], part_max)


# ---------------------------------------------------------------------------
# Stage 2: 7x7 conv (2 -> 1 channels) + sigmoid, one batch element per step.
# ---------------------------------------------------------------------------
def _conv_sigmoid_kernel(w_ref, sum_ref, max_ref, o_ref, *, ksize, H, W):
    # w_ref:   (2*k*k,) SMEM taps, layout [c, kh, kw]; avg taps pre-scaled 1/C
    # sum_ref: (1, H, W) f32 channel-sum block
    # max_ref: (1, H, W) f32 channel-max block
    # o_ref:   (1, H, W) output block
    pad = ksize // 2
    Wp = ((W + 2 * pad + 127) // 128) * 128        # 128-aligned padded width

    def pad2d(a):
        # Zero-pad to (H + 2*pad, Wp): `pad` rows/cols around the image, extra
        # zeros on the right so the padded width stays lane-aligned.
        left = jnp.zeros((H, pad), jnp.float32)
        right = jnp.zeros((H, Wp - W - pad), jnp.float32)
        a = jnp.concatenate([left, a, right], axis=1)             # (H, Wp)
        top = jnp.zeros((pad, Wp), jnp.float32)
        bot = jnp.zeros((pad, Wp), jnp.float32)
        return jnp.concatenate([top, a, bot], axis=0)             # (H+2p, Wp)

    srcs = (pad2d(sum_ref[0]), pad2d(max_ref[0]))   # channel 0 = avg(sum), 1 = max

    acc = jnp.zeros((H, W), jnp.float32)
    for ci in range(2):
        src = srcs[ci]
        base = ci * ksize * ksize
        for kw in range(ksize):
            # One lane-offset slice per (channel, kw): 2*k total lane shifts.
            col = src[:, kw:kw + W]                               # (H+2p, W)
            for kh in range(ksize):
                # Sublane-offset slices are cheap loads.
                acc = acc + w_ref[base + kh * ksize + kw] * col[kh:kh + H, :]

    o_ref[0] = jax.nn.sigmoid(acc).astype(o_ref.dtype)


# ---------------------------------------------------------------------------
# Wrapper
# ---------------------------------------------------------------------------
def _pick_c_tile(C, HW, itemsize, budget_bytes=2 << 20):
    """Largest channel tile that divides C, keeps one x block under budget, and
    is a multiple of 8 (or the full C) so the block obeys the (8,128) rule."""
    max_tc = max(1, budget_bytes // max(1, HW * itemsize))
    if C <= max_tc:
        return C
    tc = (min(C, max_tc) // 8) * 8
    while tc >= 8:
        if C % tc == 0:
            return tc
        tc -= 8
    return C  # fall back to the whole channel axis


def spatial_attention(x, conv_weight, *, kernel_size=7):
    """x: (N, C, H, W); conv_weight: (1, 2, k, k) -> (N, 1, H, W)."""
    N, C, H, W = x.shape
    assert conv_weight.shape == (1, 2, kernel_size, kernel_size)
    HW = H * W

    # Fold the 1/C of the channel-mean into the avg-channel taps so stage 1
    # only needs a running sum.
    w_avg = (conv_weight[0, 0].astype(jnp.float32) / C).reshape(-1)
    w_max = conv_weight[0, 1].astype(jnp.float32).reshape(-1)
    w_flat = jnp.concatenate([w_avg, w_max])                      # (2*k*k,)

    # Lane-dense view of x for the reduction (free reshape in the wrapper).
    x_flat = x.reshape(N, C, HW)
    tC = _pick_c_tile(C, HW, jnp.dtype(x.dtype).itemsize)
    n_c = C // tC

    sum_flat, max_flat = pl.pallas_call(
        _channel_reduce_kernel,
        out_shape=(
            jax.ShapeDtypeStruct((N, 1, HW), jnp.float32),
            jax.ShapeDtypeStruct((N, 1, HW), jnp.float32),
        ),
        grid=(N, n_c),
        in_specs=[
            pl.BlockSpec((1, tC, HW), lambda n, c: (n, c, 0)),
        ],
        out_specs=(
            pl.BlockSpec((1, 1, HW), lambda n, c: (n, 0, 0)),
            pl.BlockSpec((1, 1, HW), lambda n, c: (n, 0, 0)),
        ),
        compiler_params=pltpu.CompilerParams(
            dimension_semantics=("parallel", "arbitrary"),
        ),
    )(x_flat)

    sum_hw = sum_flat.reshape(N, H, W)
    max_hw = max_flat.reshape(N, H, W)

    conv_kernel = functools.partial(
        _conv_sigmoid_kernel, ksize=kernel_size, H=H, W=W)

    out_hw = pl.pallas_call(
        conv_kernel,
        out_shape=jax.ShapeDtypeStruct((N, H, W), x.dtype),
        grid=(N,),
        in_specs=[
            pl.BlockSpec(memory_space=pltpu.SMEM),                 # taps
            pl.BlockSpec((1, H, W), lambda n: (n, 0, 0)),          # channel-sum
            pl.BlockSpec((1, H, W), lambda n: (n, 0, 0)),          # channel-max
        ],
        out_specs=pl.BlockSpec((1, H, W), lambda n: (n, 0, 0)),
        compiler_params=pltpu.CompilerParams(
            dimension_semantics=("parallel",),
        ),
    )(w_flat, sum_hw, max_hw)

    return out_hw.reshape(N, 1, H, W)


def _reference(x, conv_weight):
    avg = jnp.mean(x, axis=1, keepdims=True)
    mx = jnp.max(x, axis=1, keepdims=True)
    cat = jnp.concatenate([avg, mx], axis=1)                      # (N, 2, H, W)
    y = jax.lax.conv_general_dilated(
        cat, conv_weight,
        window_strides=(1, 1), padding="SAME",
        dimension_numbers=("NCHW", "OIHW", "NCHW"),
    )
    return jax.nn.sigmoid(y)


if __name__ == "__main__":
    key = jax.random.PRNGKey(0)
    kx, kw = jax.random.split(key)

    N, C, H, W = 2, 4, 16, 16
    ksize = 7

    x = jax.random.normal(kx, (N, C, H, W), dtype=jnp.float32)
    conv_weight = 0.1 * jax.random.normal(kw, (1, 2, ksize, ksize),
                                          dtype=jnp.float32)

    out = jax.block_until_ready(spatial_attention(x, conv_weight,
                                                  kernel_size=ksize))
    ref = jax.block_until_ready(_reference(x, conv_weight))

    assert out.shape == (N, 1, H, W)
    assert jnp.max(jnp.abs(out - ref)) < 1e-5

    print("KERNEL_OK")
</pallas_src>

<mosaic_0001>
module attributes {stable_mosaic.version = 11 : i64} {
  func.func @_channel_reduce_kernel(%arg0: i32, %arg1: i32, %arg2: memref<1x4x256xf32, #tpu.memory_space<vmem>>, %arg3: memref<1x1x256xf32, #tpu.memory_space<vmem>>, %arg4: memref<1x1x256xf32, #tpu.memory_space<vmem>>) attributes {dimension_semantics = [#tpu.dimension_semantics<parallel>, #tpu.dimension_semantics<arbitrary>], iteration_bounds = array<i64: 2, 1>, scalar_prefetch = 0 : i64, scratch_operands = 0 : i64, tpu.core_type = #tpu.core_type<tc>, window_params = [{transform_indices = @transform_0, window_bounds = array<i64: 1, 4, 256>}, {transform_indices = @transform_1, window_bounds = array<i64: 1, 1, 256>}, {transform_indices = @transform_2, window_bounds = array<i64: 1, 1, 256>}]} {
    %c0 = arith.constant 0 : index
    %c0_0 = arith.constant 0 : index
    %c0_1 = arith.constant 0 : index
    %0 = vector.load %arg2[%c0, %c0_0, %c0_1] : memref<1x4x256xf32, #tpu.memory_space<vmem>>, vector<1x4x256xf32>
    %1 = vector.shape_cast %0 : vector<1x4x256xf32> to vector<4x256xf32>
    %cst = arith.constant dense<0.000000e+00> : vector<256xf32>
    %2 = vector.multi_reduction <add>, %1, %cst [0] : vector<4x256xf32> to vector<256xf32>
    %3 = vector.shape_cast %2 : vector<256xf32> to vector<1x256xf32>
    %cst_2 = arith.constant dense<0xFF800000> : vector<256xf32>
    %4 = vector.multi_reduction <maximumf>, %1, %cst_2 [0] : vector<4x256xf32> to vector<256xf32>
    %5 = vector.shape_cast %4 : vector<256xf32> to vector<1x256xf32>
    %c0_i32 = arith.constant 0 : i32
    %6 = arith.cmpi eq, %arg1, %c0_i32 : i32
    %7 = arith.extui %6 : i1 to i32
    %c0_i32_3 = arith.constant 0 : i32
    %8 = arith.cmpi ne, %7, %c0_i32_3 : i32
    scf.if %8 {
      %c0_6 = arith.constant 0 : index
      %c0_7 = arith.constant 0 : index
      %c0_8 = arith.constant 0 : index
      %12 = vector.load %arg3[%c0_6, %c0_7, %c0_8] : memref<1x1x256xf32, #tpu.memory_space<vmem>>, vector<1x1x256xf32>
      %13 = vector.shape_cast %12 : vector<1x1x256xf32> to vector<1x256xf32>
      %14 = vector.shape_cast %3 : vector<1x256xf32> to vector<1x1x256xf32>
      tpu.vector_store %arg3[%c0_6, %c0_7, %c0_8], %14 {strides = array<i32>} : memref<1x1x256xf32, #tpu.memory_space<vmem>>, vector<1x1x256xf32>,
      %c0_9 = arith.constant 0 : index
      %c0_10 = arith.constant 0 : index
      %c0_11 = arith.constant 0 : index
      %15 = vector.load %arg4[%c0_9, %c0_10, %c0_11] : memref<1x1x256xf32, #tpu.memory_space<vmem>>, vector<1x1x256xf32>
      %16 = vector.shape_cast %15 : vector<1x1x256xf32> to vector<1x256xf32>
      %17 = vector.shape_cast %5 : vector<1x256xf32> to vector<1x1x256xf32>
      tpu.vector_store %arg4[%c0_9, %c0_10, %c0_11], %17 {strides = array<i32>} : memref<1x1x256xf32, #tpu.memory_space<vmem>>, vector<1x1x256xf32>,
    } else {
    }
    %c0_i32_4 = arith.constant 0 : i32
    %9 = arith.cmpi ne, %arg1, %c0_i32_4 : i32
    %10 = arith.extui %9 : i1 to i32
    %c0_i32_5 = arith.constant 0 : i32
    %11 = arith.cmpi ne, %10, %c0_i32_5 : i32
    scf.if %11 {
      %c0_6 = arith.constant 0 : index
      %c0_7 = arith.constant 0 : index
      %c0_8 = arith.constant 0 : index
      %12 = vector.load %arg3[%c0_6, %c0_7, %c0_8] : memref<1x1x256xf32, #tpu.memory_space<vmem>>, vector<1x1x256xf32>
      %13 = vector.shape_cast %12 : vector<1x1x256xf32> to vector<1x256xf32>
      %14 = arith.addf %13, %3 : vector<1x256xf32>
      %c0_9 = arith.constant 0 : index
      %c0_10 = arith.constant 0 : index
      %c0_11 = arith.constant 0 : index
      %15 = vector.load %arg3[%c0_9, %c0_10, %c0_11] : memref<1x1x256xf32, #tpu.memory_space<vmem>>, vector<1x1x256xf32>
      %16 = vector.shape_cast %15 : vector<1x1x256xf32> to vector<1x256xf32>
      %17 = vector.shape_cast %14 : vector<1x256xf32> to vector<1x1x256xf32>
      tpu.vector_store %arg3[%c0_9, %c0_10, %c0_11], %17 {strides = array<i32>} : memref<1x1x256xf32, #tpu.memory_space<vmem>>, vector<1x1x256xf32>,
      %c0_12 = arith.constant 0 : index
      %c0_13 = arith.constant 0 : index
      %c0_14 = arith.constant 0 : index
      %18 = vector.load %arg4[%c0_12, %c0_13, %c0_14] : memref<1x1x256xf32, #tpu.memory_space<vmem>>, vector<1x1x256xf32>
      %19 = vector.shape_cast %18 : vector<1x1x256xf32> to vector<1x256xf32>
      %20 = arith.maximumf %19, %5 : vector<1x256xf32>
      %c0_15 = arith.constant 0 : index
      %c0_16 = arith.constant 0 : index
      %c0_17 = arith.constant 0 : index
      %21 = vector.load %arg4[%c0_15, %c0_16, %c0_17] : memref<1x1x256xf32, #tpu.memory_space<vmem>>, vector<1x1x256xf32>
      %22 = vector.shape_cast %21 : vector<1x1x256xf32> to vector<1x256xf32>
      %23 = vector.shape_cast %20 : vector<1x256xf32> to vector<1x1x256xf32>
      tpu.vector_store %arg4[%c0_15, %c0_16, %c0_17], %23 {strides = array<i32>} : memref<1x1x256xf32, #tpu.memory_space<vmem>>, vector<1x1x256xf32>,
    } else {
    }
    return
  }
  func.func @transform_0(%arg0: i32, %arg1: i32) -> (i32, i32, i32) {
    %c0_i32 = arith.constant 0 : i32
    %c0_i32_0 = arith.constant 0 : i32
    return %arg0, %arg1, %c0_i32 : i32, i32, i32
  }
  func.func @transform_1(%arg0: i32, %arg1: i32) -> (i32, i32, i32) {
    %c0_i32 = arith.constant 0 : i32
    %c0_i32_0 = arith.constant 0 : i32
    %c0_i32_1 = arith.constant 0 : i32
    return %arg0, %c0_i32, %c0_i32_0 : i32, i32, i32
  }
  func.func @transform_2(%arg0: i32, %arg1: i32) -> (i32, i32, i32) {
    %c0_i32 = arith.constant 0 : i32
    %c0_i32_0 = arith.constant 0 : i32
    %c0_i32_1 = arith.constant 0 : i32
    return %arg0, %c0_i32, %c0_i32_0 : i32, i32, i32
  }
}

</mosaic_0001>

<llo_original>
// kernel: tpu_custom_call.1
$region0: #{tpu_custom_call.1}
  #allocation0 [shape = 'u32[]', space=smem, size = 0x4, offset = 0x4, fixed_abs, tag = 'smem constant byte address 0x4 - core index']
  #allocation1 [shape = 'u32[144,128]{1,0:T(1,128)}', space=vmem, size = 0x12000, scoped, tag = 'internal scratch']
  %s0 = inlined_call_operand.hbm [shape: f32[2,4,256], index: 0, kind: input, shape index: {}]
  %s1 = inlined_call_operand.hbm [shape: f32[2,1,256], index: 1, kind: output, shape index: {0}]
  %s2 = inlined_call_operand.hbm [shape: f32[2,1,256], index: 2, kind: output, shape index: {1}]
  %3 = xla_tuple %s1, %s2
  %s4 = sld [smem:[#allocation0]]
  $region57: #{tpu_custom_call.1} parent=0
    _
  %s6 = ssub.s32 1, %s4
  %s7 = scalar_select 0, %s6, %s4
  $region1: #{tpu_custom_call.1} parent=0
    #allocation2 [shape = 'u8[8192]{0}', space=vmem, size = 0x2000, scoped, tag = 'input window, operand 0']
    #allocation3 [shape = 's32[2]{0}', space=sflag, size = 0x8, scoped, tag = 'scoped memory for tpu_custom_call.1']
    #allocation4 [shape = 's32[2]{0}', space=sflag, size = 0x8, scoped, tag = 'scoped memory for tpu_custom_call.1']
    #allocation5 [shape = 'u8[2048]{0}', space=vmem, size = 0x800, scoped, tag = 'output window, operand 0']
    #allocation6 [shape = 'u8[2048]{0}', space=vmem, size = 0x800, scoped, tag = 'output window, operand 1']
    #allocation7 [shape = 's32[2]{0}', space=sflag, size = 0x8, scoped, tag = 'scoped memory for tpu_custom_call.1']
    %8 = vsyncpa [#allocation3], 0
    %s9 = scalar_lea.sflag [#allocation3], 1
    %10 = vsyncpa %s9, 0
    %11 = vsyncpa [#allocation4], 0
    %s12 = scalar_lea.sflag [#allocation4], 1
    %13 = vsyncpa %s12, 0
    %14 = vsyncpa [#allocation7], 0
    %s15 = scalar_lea.sflag [#allocation7], 1
    %16 = vsyncpa %s15, 0
    loop: start=0, step=1, limit=4
    $region2: #{tpu_custom_call.1} parent=1 // loop_pre_header
      _
    $region3: #{tpu_custom_call.1} parent=1 // loop_header
      %s18 = sphi 0, %s22
      %p19 = scmp.ge.s32.totalorder %s18, 4
      %s25 = sphi 0, %s37
      %s26 = sphi 0, %s33
      %s27 = sphi 0, %s25
      %s28 = sphi 0, %s26
      %s29 = sphi 0, %s27
      %s30 = sphi 0, %s28
      %s42 = sphi 0, %s44
      %s45 = sphi 0, %s42
      %s46 = sphi 0, %s45
      %s62 = sphi 0, %s46
      %s68 = sphi 0, %s70
      %s71 = sphi 0, %s68
      %s72 = sphi 0, %s71
      %s88 = sphi 0, %s72
      %s94 = sphi 0, %s96
      %s97 = sphi 0, %s94
      %s98 = sphi 0, %s97
      %s114 = sphi 0, %s98
    $region4: #{tpu_custom_call.1} parent=1 // loop_header_branch
      %21 = sbr.rel (%p19) target = $region8
    $region5: #{tpu_custom_call.1} parent=1 // loop_body
      %s23 = ssub.s32 %s18, 1
      %s24 = ssub.s32 %s18, 2
      %s31 = sadd.s32 1, %s26
      %p32 = scmp.ge.s32.totalorder %s31, 1
      %s33 = scalar_select %p32, 0, %s31
      %s34 = sadd.s32 1, %s25
      %s35 = scalar_select %p32, %s34, %s25
      %p36 = scmp.ge.s32.totalorder %s35, 2
      %s37 = scalar_select %p36, 0, %s35
      %s38 = ssub.s32 %s25, %s37
      %s39 = ssub.s32 %s26, %s33
      %s40 = sor.u32 %s38, %s39
      %p41 = scmp.eq.s32.totalorder %s40, 0
      %s43 = sadd.s32 %s42, 1
      %s44 = scalar_select %p41, %s42, %s43
      %p47 = pneg %p41
      %p48 = scmp.eq.s32.totalorder %s18, 1
      %p49 = por %p47, %p48
      %p50 = scmp.ne.s32.totalorder %s42, %s45
      %p51 = scmp.eq.s32.totalorder %s18, 0
      %p52 = por %p50, %p51
      %p53 = scmp.ne.s32.totalorder %s42, %s45
      %p54 = scmp.eq.s32.totalorder %s23, 1
      %p55 = por %p53, %p54
      %p56 = scmp.ne.s32.totalorder %s45, %s46
      %p57 = scmp.eq.s32.totalorder %s23, 0
      %p58 = por %p56, %p57
      %p59 = scmp.ne.s32.totalorder %s45, %s46
      %p60 = scmp.eq.s32.totalorder %s24, 1
      %p61 = por %p59, %p60
      %p63 = scmp.ne.s32.totalorder %s46, %s62
      %p64 = scmp.eq.s32.totalorder %s24, 0
      %p65 = por %p63, %p64
      %s66 = ssub.s32 %s25, %s37
      %p67 = scmp.eq.s32.totalorder %s66, 0
      %s69 = sadd.s32 %s68, 1
      %s70 = scalar_select %p67, %s68, %s69
      %p73 = pneg %p67
      %p74 = scmp.eq.s32.totalorder %s18, 1
      %p75 = por %p73, %p74
      %p76 = scmp.ne.s32.totalorder %s68, %s71
      %p77 = scmp.eq.s32.totalorder %s18, 0
      %p78 = por %p76, %p77
      %p79 = scmp.ne.s32.totalorder %s68, %s71
      %p80 = scmp.eq.s32.totalorder %s23, 1
      %p81 = por %p79, %p80
      %p82 = scmp.ne.s32.totalorder %s71, %s72
      %p83 = scmp.eq.s32.totalorder %s23, 0
      %p84 = por %p82, %p83
      %p85 = scmp.ne.s32.totalorder %s71, %s72
      %p86 = scmp.eq.s32.totalorder %s24, 1
      %p87 = por %p85, %p86
      %p89 = scmp.ne.s32.totalorder %s72, %s88
      %p90 = scmp.eq.s32.totalorder %s24, 0
      %p91 = por %p89, %p90
      %s92 = ssub.s32 %s25, %s37
      %p93 = scmp.eq.s32.totalorder %s92, 0
      %s95 = sadd.s32 %s94, 1
      %s96 = scalar_select %p93, %s94, %s95
      %p99 = pneg %p93
      %p100 = scmp.eq.s32.totalorder %s18, 1
      %p101 = por %p99, %p100
      %p102 = scmp.ne.s32.totalorder %s94, %s97
      %p103 = scmp.eq.s32.totalorder %s18, 0
      %p104 = por %p102, %p103
      %p105 = scmp.ne.s32.totalorder %s94, %s97
      %p106 = scmp.eq.s32.totalorder %s23, 1
      %p107 = por %p105, %p106
      %p108 = scmp.ne.s32.totalorder %s97, %s98
      %p109 = scmp.eq.s32.totalorder %s23, 0
      %p110 = por %p108, %p109
      %p111 = scmp.ne.s32.totalorder %s97, %s98
      %p112 = scmp.eq.s32.totalorder %s24, 1
      %p113 = por %p111, %p112
      %p115 = scmp.ne.s32.totalorder %s98, %s114
      %p116 = scmp.eq.s32.totalorder %s24, 0
      %p117 = por %p115, %p116
      %p118 = scmp.le.s32.totalorder 1, %s18
      %p119 = scmp.lt.s32.totalorder %s18, 3
      %p120 = pnand %p118, %p119
      %p121 = pneg %p120
      // Predicated region
      $region9: #{tpu_custom_call.1} parent=5 // pred_check
        _
      $region10: #{tpu_custom_call.1} parent=5 // pred_check_branch
        %123 = sbr.rel (%p120) target = $region12
      $region11: #{tpu_custom_call.1} parent=5 // pred_region
        %s124 = ssub.s32 %s18, 1
      $region12: #{tpu_custom_call.1} parent=5 // pred_fallthru
        _
      %p125 = scmp.lt.s32.totalorder %s18, 2
      // Predicated region
      $region13: #{tpu_custom_call.1} parent=5 // pred_check
        %p126 = pneg %p125
      $region14: #{tpu_custom_call.1} parent=5 // pred_check_branch
        %128 = sbr.rel (%p126) target = $region16
      $region15: #{tpu_custom_call.1} parent=5 // pred_region
        // Predicated region
        $region17: #{tpu_custom_call.1} parent=15 // pred_check
          %p129 = pneg %p52
        $region18: #{tpu_custom_call.1} parent=15 // pred_check_branch
          %131 = sbr.rel (%p129) target = $region20
        $region19: #{tpu_custom_call.1} parent=15 // pred_region
          %s132 = sand.u32 %s42, 1
          %s133 = scalar_lea.sflag [#allocation3], %s132
          %s134 = sand.u32 %s42, 1
          %s135 = smul.addr %s134, 8
          %s136 = scalar_lea.vmem [#allocation2], %s135
          %s138 = ssub.s32 128, 128
          %139 = vsyncadd %s133, %s138
          %s140 = smul.addr %s26, 2
          %s141 = smul.addr %s25, 2
          %s142 = sadd.s32 %s140, %s141
          %s143 = smul.addr %s142, 64
          %s144 = scalar_lea.hbm %s0, %s143
          %s146 = sshll.u32 %s136, 4
          %s147 = int_to_ptr.vmem [resolvable:$true] %s146
          %149 = dma.hbm_to_vmem [thread:$0]  %s144, 128, %s147, %s133
        $region20: #{tpu_custom_call.1} parent=15 // pred_fallthru
          _
      $region16: #{tpu_custom_call.1} parent=5 // pred_fallthru
        _
      %p150 = scmp.le.s32.totalorder 1, %s18
      %p151 = scmp.lt.s32.totalorder %s18, 3
      %p152 = pnand %p150, %p151
      %p153 = pneg %p152
      // Predicated region
      $region21: #{tpu_custom_call.1} parent=5 // pred_check
        _
      $region22: #{tpu_custom_call.1} parent=5 // pred_check_branch
        %155 = sbr.rel (%p152) target = $region24
      $region23: #{tpu_custom_call.1} parent=5 // pred_region
        %s156 = ssub.s32 %s18, 1
        %s157 = sand.u32 %s45, 1
        %s158 = scalar_lea.sflag [#allocation3], %s157
        %s159 = sand.u32 %s45, 1
        %s160 = smul.addr %s159, 8
        %s161 = scalar_lea.vmem [#allocation2], %s160
        // Predicated region
        $region25: #{tpu_custom_call.1} parent=23 // pred_check
          %p162 = pneg %p58
        $region26: #{tpu_custom_call.1} parent=23 // pred_check_branch
          %164 = sbr.rel (%p162) target = $region28
        $region27: #{tpu_custom_call.1} parent=23 // pred_region
          %165 = dma.done %s158, 128
        $region28: #{tpu_custom_call.1} parent=23 // pred_fallthru
          _
        %s166 = sand.u32 %s45, 1
        %s167 = scalar_lea.sflag [#allocation3], %s166
        %s168 = sand.u32 %s45, 1
        %s169 = smul.addr %s168, 8
        %s170 = scalar_lea.vmem [#allocation2], %s169
        %p171 = pneg %p58
        %p172 = pneg %p55
        %p173 = pneg %p84
        %p174 = pneg %p81
        %s175 = sand.u32 %s71, 1
        %s176 = scalar_lea.sflag [#allocation4], %s175
        %s177 = sand.u32 %s71, 1
        %s178 = smul.addr %s177, 2
        %s179 = scalar_lea.vmem [#allocation5], %s178
        %p180 = pneg %p110
        %p181 = pneg %p107
        %s182 = sand.u32 %s97, 1
        %s183 = scalar_lea.sflag [#allocation7], %s182
        %s184 = sand.u32 %s97, 1
        %s185 = smul.addr %s184, 2
        %s186 = scalar_lea.vmem [#allocation6], %s185
        %v187 = vld [vmem:[%s161] sm:$0xff]
        %v189 = vcombine.high %v187, %v187
        %vm191 = vcmask 1043456
        %v192 = vsel %vm191, %v187, 0.0
        %v193 = vrot.slane %v192, 4
        %v194 = vadd.f32 %v192, %v193
        %v195 = vrot.slane %v194, 2
        %v196 = vadd.f32 %v194, %v195
        %v197 = vrot.slane %v196, 1
        %v198 = vadd.f32 %v196, %v197
        %v199 = vsel %vm191, %v189, 0.0
        %v200 = vrot.slane %v199, 4
        %v201 = vadd.f32 %v199, %v200
        %v202 = vrot.slane %v201, 2
        %v203 = vadd.f32 %v201, %v202
        %v204 = vrot.slane %v203, 1
        %v205 = vadd.f32 %v203, %v204
        %v206 = vsel %vm191, %v187, -inf
        %v207 = vrot.slane %v206, 4
        %v208 = vmax.f32 %v206, %v207
        %v209 = vrot.slane %v208, 2
        %v210 = vmax.f32 %v208, %v209
        %v211 = vrot.slane %v210, 1
        %v212 = vmax.f32 %v210, %v211
        %v213 = vsel %vm191, %v189, -inf
        %v214 = vrot.slane %v213, 4
        %v215 = vmax.f32 %v213, %v214
        %v216 = vrot.slane %v215, 2
        %v217 = vmax.f32 %v215, %v216
        %v218 = vrot.slane %v217, 1
        %v219 = vmax.f32 %v217, %v218
        %p220 = scmp.eq.s32.totalorder %s28, 0
        // Predicated region
        $region29: #{tpu_custom_call.1} parent=23 // pred_check
          %p221 = pneg %p220
        $region30: #{tpu_custom_call.1} parent=23 // pred_check_branch
          %223 = sbr.rel (%p221) target = $region32
        $region31: #{tpu_custom_call.1} parent=23 // pred_region
          %v226 = vcombine.low %v198, %v205
          %v228 = vunpack.c.l.s4 1966171168
          %v229 = vunpack.c.0.s8 %v228
          %v230 = vlaneseq
          %v231 = vshrl.u32 %v230, 7
          %v232 = vsub.s32 %v229, %v231
          %v233 = vrot.slane %v226, %v232
          %v235 = vunpack.c.l.s4 1966171168
          %v236 = vunpack.c.0.s8 %v235
          %v237 = vlaneseq
          %v238 = vshrl.u32 %v237, 7
          %v239 = vsub.s32 %v236, %v238
          %v240 = vrot.slane %v233, %v239
          %v242 = vlaneseq
          %vm243 = vcmp.ge.s32.totalorder %v242, 0
          %vm244 = vcmp.lt.s32.totalorder %v242, 256
          %vm245 = vmand %vm243, %vm244
          %246 = vst.msk [vmem:[%s179] sm:$0x3] %vm245, %v240
          %v249 = vcombine.low %v212, %v219
          %v251 = vunpack.c.l.s4 1966171168
          %v252 = vunpack.c.0.s8 %v251
          %v253 = vlaneseq
          %v254 = vshrl.u32 %v253, 7
          %v255 = vsub.s32 %v252, %v254
          %v256 = vrot.slane %v249, %v255
          %v258 = vunpack.c.l.s4 1966171168
          %v259 = vunpack.c.0.s8 %v258
          %v260 = vlaneseq
          %v261 = vshrl.u32 %v260, 7
          %v262 = vsub.s32 %v259, %v261
          %v263 = vrot.slane %v256, %v262
          %265 = vst.msk [vmem:[%s186] sm:$0x3] %vm245, %v263
        $region32: #{tpu_custom_call.1} parent=23 // pred_fallthru
          _
        %p266 = scmp.ne.s32.totalorder %s28, 0
        // Predicated region
        $region33: #{tpu_custom_call.1} parent=23 // pred_check
          %p267 = pneg %p266
        $region34: #{tpu_custom_call.1} parent=23 // pred_check_branch
          %269 = sbr.rel (%p267) target = $region36
        $region35: #{tpu_custom_call.1} parent=23 // pred_region
          %v270 = vld [vmem:[%s179] sm:$0x3]
          %v273 = vcombine.low %v198, %v205
          %v275 = vunpack.c.l.s4 1966171168
          %v276 = vunpack.c.0.s8 %v275
          %v277 = vlaneseq
          %v278 = vshrl.u32 %v277, 7
          %v279 = vsub.s32 %v276, %v278
          %v280 = vrot.slane %v273, %v279
          %v282 = vunpack.c.l.s4 1966171168
          %v283 = vunpack.c.0.s8 %v282
          %v284 = vlaneseq
          %v285 = vshrl.u32 %v284, 7
          %v286 = vsub.s32 %v283, %v285
          %v287 = vrot.slane %v280, %v286
          %v289 = vadd.f32 %v270, %v287
          %v290 = vlaneseq
          %vm291 = vcmp.ge.s32.totalorder %v290, 0
          %vm292 = vcmp.lt.s32.totalorder %v290, 256
          %vm293 = vmand %vm291, %vm292
          %294 = vst.msk [vmem:[%s179] sm:$0x3] %vm293, %v289
          %v295 = vld [vmem:[%s186] sm:$0x3]
          %v298 = vcombine.low %v212, %v219
          %v300 = vunpack.c.l.s4 1966171168
          %v301 = vunpack.c.0.s8 %v300
          %v302 = vlaneseq
          %v303 = vshrl.u32 %v302, 7
          %v304 = vsub.s32 %v301, %v303
          %v305 = vrot.slane %v298, %v304
          %v307 = vunpack.c.l.s4 1966171168
          %v308 = vunpack.c.0.s8 %v307
          %v309 = vlaneseq
          %v310 = vshrl.u32 %v309, 7
          %v311 = vsub.s32 %v308, %v310
          %v312 = vrot.slane %v305, %v311
          %v314 = vmax.f32 %v295, %v312
          %315 = vst.msk [vmem:[%s186] sm:$0x3] %vm293, %v314
        $region36: #{tpu_custom_call.1} parent=23 // pred_fallthru
          _
        %s316 = sand.u32 %s71, 1
        %s317 = scalar_lea.sflag [#allocation4], %s316
        %s318 = sand.u32 %s71, 1
        %s319 = smul.addr %s318, 2
        %s320 = scalar_lea.vmem [#allocation5], %s319
        %s321 = sand.u32 %s97, 1
        %s322 = scalar_lea.sflag [#allocation7], %s321
        %s323 = sand.u32 %s97, 1
        %s324 = smul.addr %s323, 2
        %s325 = scalar_lea.vmem [#allocation6], %s324
        // Predicated region
        $region37: #{tpu_custom_call.1} parent=23 // pred_check
          %p326 = pneg %p81
        $region38: #{tpu_custom_call.1} parent=23 // pred_check_branch
          %328 = sbr.rel (%p326) target = $region40
        $region39: #{tpu_custom_call.1} parent=23 // pred_region
          %s330 = ssub.s32 32, 32
          %331 = vsyncadd %s317, %s330
          %s332 = smul.addr %s27, 2
          %s333 = smul.addr %s332, 16
          %s334 = scalar_lea.hbm %s1, %s333
          %s336 = sshll.u32 %s320, 4
          %s337 = int_to_ptr.vmem [resolvable:$true] %s336
          %339 = dma.vmem_to_hbm [thread:$0]  %s337, 32, %s334, %s317
        $region40: #{tpu_custom_call.1} parent=23 // pred_fallthru
          _
        // Predicated region
        $region41: #{tpu_custom_call.1} parent=23 // pred_check
          %p340 = pneg %p107
        $region42: #{tpu_custom_call.1} parent=23 // pred_check_branch
          %342 = sbr.rel (%p340) target = $region44
        $region43: #{tpu_custom_call.1} parent=23 // pred_region
          %s344 = ssub.s32 32, 32
          %345 = vsyncadd %s322, %s344
          %s346 = smul.addr %s27, 2
          %s347 = smul.addr %s346, 16
          %s348 = scalar_lea.hbm %s2, %s347
          %s350 = sshll.u32 %s325, 4
          %s351 = int_to_ptr.vmem [resolvable:$true] %s350
          %353 = dma.vmem_to_hbm [thread:$0]  %s351, 32, %s348, %s322
        $region44: #{tpu_custom_call.1} parent=23 // pred_fallthru
          _
      $region24: #{tpu_custom_call.1} parent=5 // pred_fallthru
        _
      %p354 = scmp.le.s32.totalorder 2, %s18
      // Predicated region
      $region45: #{tpu_custom_call.1} parent=5 // pred_check
        %p355 = pneg %p354
      $region46: #{tpu_custom_call.1} parent=5 // pred_check_branch
        %357 = sbr.rel (%p355) target = $region48
      $region47: #{tpu_custom_call.1} parent=5 // pred_region
        %s358 = ssub.s32 %s18, 2
        // Predicated region
        $region49: #{tpu_custom_call.1} parent=47 // pred_check
          %p359 = pneg %p87
        $region50: #{tpu_custom_call.1} parent=47 // pred_check_branch
          %361 = sbr.rel (%p359) target = $region52
        $region51: #{tpu_custom_call.1} parent=47 // pred_region
          %s362 = sand.u32 %s72, 1
          %s363 = scalar_lea.sflag [#allocation4], %s362
          %s364 = sand.u32 %s72, 1
          %s365 = smul.addr %s364, 2
          %s366 = scalar_lea.vmem [#allocation5], %s365
          %367 = dma.done %s363, 32
        $region52: #{tpu_custom_call.1} parent=47 // pred_fallthru
          _
        // Predicated region
        $region53: #{tpu_custom_call.1} parent=47 // pred_check
          %p368 = pneg %p113
        $region54: #{tpu_custom_call.1} parent=47 // pred_check_branch
          %370 = sbr.rel (%p368) target = $region56
        $region55: #{tpu_custom_call.1} parent=47 // pred_region
          %s371 = sand.u32 %s98, 1
          %s372 = scalar_lea.sflag [#allocation7], %s371
          %s373 = sand.u32 %s98, 1
          %s374 = smul.addr %s373, 2
          %s375 = scalar_lea.vmem [#allocation6], %s374
          %376 = dma.done %s372, 32
        $region56: #{tpu_custom_call.1} parent=47 // pred_fallthru
          _
      $region48: #{tpu_custom_call.1} parent=5 // pred_fallthru
        _
    $region6: #{tpu_custom_call.1} parent=1 // loop_footer
      %s22 = sadd.s32 1, %s18
    $region7: #{tpu_custom_call.1} parent=1 // loop_footer_branch
      %17 = sbr.rel target = $region3
    $region8: #{tpu_custom_call.1} parent=1 // loop_exit
      _
    %377 = vsyncpa [#allocation3], 1
    %s378 = scalar_lea.sflag [#allocation3], 1
    %379 = vsyncpa %s378, 1
    %380 = vsyncpa [#allocation4], 1
    %s381 = scalar_lea.sflag [#allocation4], 1
    %382 = vsyncpa %s381, 1
    %383 = vsyncpa [#allocation7], 1
    %s384 = scalar_lea.sflag [#allocation7], 1
    %385 = vsyncpa %s384, 1

</llo_original>
